<compile_context>
chip_gen: v7x
topology: tpu7x:2x2x1
jax: 0.10.0
libtpu: 0.0.40
codegen_flags: <defaults>
</compile_context>

<pallas_src>
import functools

import jax
import jax.numpy as jnp
from jax.experimental import pallas as pl
from jax.experimental.pallas import tpu as pltpu


def _round_up(n, m):
    return ((n + m - 1) // m) * m


def _pe_add_flat_kernel(x_ref, pe_ref, o_ref, *, batch):
    # x_ref/o_ref: (ts, B*D) tile; pe_ref: (ts, D) matching PE rows (table dtype).
    pe = pe_ref[...].astype(x_ref.dtype)          # tile-sized cast: VPU filler
    o_ref[...] = x_ref[...] + jnp.tile(pe, (1, batch))   # lane replication (XLU filler)


def _pe_add_3d_kernel(x_ref, pe_ref, o_ref):
    # x_ref/o_ref: (ts, B, D) tile; pe_ref: (ts, D) matching PE rows.
    pe = pe_ref[...].astype(x_ref.dtype)
    o_ref[...] = x_ref[...] + pe[:, None, :]


def make_pe_table(d_model, max_len=5000, dtype=jnp.float32):
    """Reproduce this module's buffer exactly (before unsqueeze/transpose):
         div_term[j] = 1 / 10000 ** (2*j / d_model),  j = 0..d_model-1
         pe[i, 0::2] = sin(i * div_term[0::2])
         pe[i, 1::2] = cos(i * div_term[1::2])
    Returned shape: (max_len, d_model)."""
    position = jnp.arange(max_len, dtype=jnp.float32)[:, None]
    div_term = 1.0 / (10000.0 ** (2.0 * jnp.arange(d_model, dtype=jnp.float32) / d_model))
    pe = jnp.zeros((max_len, d_model), dtype=jnp.float32)
    pe = pe.at[:, 0::2].set(jnp.sin(position * div_term[0::2]))
    pe = pe.at[:, 1::2].set(jnp.cos(position * div_term[1::2]))
    return pe.astype(dtype)


def positional_encoding(x, pe_full, *, seq_tile=None,
                        target_block_bytes=6 * 1024 * 1024,
                        donate_x=False):
    """x: (S, B, D); pe_full: (max_len, D). Returns x + pe_full[:S][:, None, :]."""
    S, B, D = x.shape
    max_len, d_pe = pe_full.shape
    assert d_pe == D, "pe table d_model mismatch"
    assert S <= max_len, "sequence longer than PE table"

    x_itemsize = jnp.dtype(x.dtype).itemsize
    pe_itemsize = jnp.dtype(pe_full.dtype).itemsize

    # ---- seq-tile sizing: byte-based (HBM-bandwidth bound -> big DMAs) ----------
    if seq_tile is None:
        row_bytes = B * D * x_itemsize
        ts = max(1, target_block_bytes // row_bytes)
        if S > 8:
            # v7x megacore: keep >= 2 grid blocks so "parallel" can shard across TCs.
            ts = min(ts, _round_up(-(-S // 2), 8))
        ts = min(ts, _round_up(S, 8))
        ts = max(8, (ts // 8) * 8)        # sublane-aligned (PE tile sublane dim = ts)
    else:
        ts = seq_tile
    grid = (pl.cdiv(S, ts),)

    # ---- VMEM footprint -> explicit compiler limit ------------------------------
    x_block_bytes = ts * B * D * x_itemsize
    pe_block_bytes = ts * D * pe_itemsize
    # double-buffered x-in + out + pe, plus in-kernel temps (cast/tiled pe) + headroom
    vmem_limit = 4 * x_block_bytes + 2 * pe_block_bytes + x_block_bytes + (4 << 20)
    vmem_limit = max(int(vmem_limit), 16 << 20)

    cost = pl.CostEstimate(
        flops=S * B * D,
        transcendentals=0,
        bytes_accessed=2 * S * B * D * x_itemsize + S * D * pe_itemsize,
    )
    compiler_params = pltpu.CompilerParams(
        dimension_semantics=("parallel",),     # megacore-shard seq blocks on v7x
        vmem_limit_bytes=vmem_limit,
    )
    io_alias = {0: 0} if donate_x else {}

    # ---- small-batch path: flatten (S, B, D) -> (S, B*D) for lane-dense stores --
    sublane_pack = max(1, 32 // x_itemsize)    # 8 rows/vreg f32, 16 bf16, 32 int8
    if B < sublane_pack:
        x_flat = x.reshape(S, B * D)           # contiguous reshape: free
        out_flat = pl.pallas_call(
            functools.partial(_pe_add_flat_kernel, batch=B),
            out_shape=jax.ShapeDtypeStruct((S, B * D), x.dtype),
            grid_spec=pltpu.PrefetchScalarGridSpec(
                num_scalar_prefetch=0,
                grid=grid,
                in_specs=[
                    pl.BlockSpec((ts, B * D), lambda s: (s, 0)),  # x: ts seq rows
                    pl.BlockSpec((ts, D), lambda s: (s, 0)),      # matching PE rows
                ],
                out_specs=pl.BlockSpec((ts, B * D), lambda s: (s, 0)),
            ),
            compiler_params=compiler_params,
            cost_estimate=cost,
            input_output_aliases=io_alias,
        )(x_flat, pe_full)
        return out_flat.reshape(S, B, D)

    # ---- large-batch path: (ts, B, D) blocks (B, D are full dims, dense) --------
    return pl.pallas_call(
        _pe_add_3d_kernel,
        out_shape=jax.ShapeDtypeStruct((S, B, D), x.dtype),
        grid_spec=pltpu.PrefetchScalarGridSpec(
            num_scalar_prefetch=0,
            grid=grid,
            in_specs=[
                pl.BlockSpec((ts, B, D), lambda s: (s, 0, 0)),
                pl.BlockSpec((ts, D), lambda s: (s, 0)),
            ],
            out_specs=pl.BlockSpec((ts, B, D), lambda s: (s, 0, 0)),
        ),
        compiler_params=compiler_params,
        cost_estimate=cost,
        input_output_aliases=io_alias,
    )(x, pe_full)


if __name__ == "__main__":
    S, B, D = 8, 2, 32          # seq_len, batch, d_model (small demo shapes)
    MAX_LEN = 5000              # matches the nn.Module default

    key = jax.random.PRNGKey(0)
    x = jax.random.normal(key, (S, B, D), dtype=jnp.float32)

    pe_full = make_pe_table(D, max_len=MAX_LEN)

    out = positional_encoding(x, pe_full)
    out = jax.block_until_ready(out)

    # Sanity check against plain-JAX reference (same semantics as PyTorch forward).
    ref = x + pe_full[:S].astype(x.dtype)[:, None, :]
    assert out.shape == (S, B, D)
    assert jnp.allclose(out, ref, atol=1e-6), "mismatch vs reference"

    print("KERNEL_OK")
</pallas_src>

<mosaic_0001>
module attributes {stable_mosaic.version = 11 : i64} {
  func.func @_pe_add_flat_kernel(%arg0: i32, %arg1: memref<8x64xf32, #tpu.memory_space<vmem>>, %arg2: memref<8x32xf32, #tpu.memory_space<vmem>>, %arg3: memref<8x64xf32, #tpu.memory_space<vmem>>) attributes {dimension_semantics = [#tpu.dimension_semantics<parallel>], iteration_bounds = array<i64: 1>, scalar_prefetch = 0 : i64, scratch_operands = 0 : i64, tpu.core_type = #tpu.core_type<tc>, window_params = [{transform_indices = @transform_0, window_bounds = array<i64: 8, 64>}, {transform_indices = @transform_1, window_bounds = array<i64: 8, 32>}, {transform_indices = @transform_2, window_bounds = array<i64: 8, 64>}]} {
    %c0 = arith.constant 0 : index
    %c0_0 = arith.constant 0 : index
    %0 = vector.load %arg2[%c0, %c0_0] : memref<8x32xf32, #tpu.memory_space<vmem>>, vector<8x32xf32>
    %c0_1 = arith.constant 0 : index
    %c0_2 = arith.constant 0 : index
    %1 = vector.load %arg1[%c0_1, %c0_2] : memref<8x64xf32, #tpu.memory_space<vmem>>, vector<8x64xf32>
    %2 = tpu.concatenate %0, %0 in 1 : vector<8x32xf32>, vector<8x32xf32> -> vector<8x64xf32>
    %3 = arith.addf %1, %2 : vector<8x64xf32>
    %c0_3 = arith.constant 0 : index
    %c0_4 = arith.constant 0 : index
    %4 = vector.load %arg3[%c0_3, %c0_4] : memref<8x64xf32, #tpu.memory_space<vmem>>, vector<8x64xf32>
    tpu.vector_store %arg3[%c0_3, %c0_4], %3 {strides = array<i32>} : memref<8x64xf32, #tpu.memory_space<vmem>>, vector<8x64xf32>,
    return
  }
  func.func @transform_0(%arg0: i32) -> (i32, i32) {
    %c0_i32 = arith.constant 0 : i32
    %c0_i32_0 = arith.constant 0 : i32
    return %arg0, %c0_i32 : i32, i32
  }
  func.func @transform_1(%arg0: i32) -> (i32, i32) {
    %c0_i32 = arith.constant 0 : i32
    %c0_i32_0 = arith.constant 0 : i32
    return %arg0, %c0_i32 : i32, i32
  }
  func.func @transform_2(%arg0: i32) -> (i32, i32) {
    %c0_i32 = arith.constant 0 : i32
    %c0_i32_0 = arith.constant 0 : i32
    return %arg0, %c0_i32 : i32, i32
  }
}

</mosaic_0001>

<llo_original>
// kernel: tpu_custom_call.1
$region0: #{tpu_custom_call.1}
  #allocation0 [shape = 'u32[]', space=smem, size = 0x4, offset = 0x4, fixed_abs, tag = 'smem constant byte address 0x4 - core index']
  #allocation1 [shape = 'u32[144,128]{1,0:T(1,128)}', space=vmem, size = 0x12000, scoped, tag = 'internal scratch']
  %s0 = inlined_call_operand.vmem [shape: f32[8,64], index: 0, kind: input, shape index: {}]
  %s1 = inlined_call_operand.vmem [shape: f32[5000,32], index: 1, kind: input, shape index: {}]
  %s2 = inlined_call_operand.hbm [shape: f32[8,64], index: 2, kind: output, shape index: {}]
  %s3 = sld [smem:[#allocation0]]
  $region18: #{tpu_custom_call.1} parent=0
    _
  %s5 = ssub.s32 1, %s3
  %s6 = scalar_select 0, %s5, %s3
  $region1: #{tpu_custom_call.1} parent=0
    #allocation2 [shape = 'u8[4096]{0}', space=vmem, size = 0x1000, scoped, tag = 'output window, operand 0, single buffered']
    #allocation3 [shape = 's32[1]{0}', space=sflag, size = 0x4, scoped, tag = 'scoped memory for tpu_custom_call.1']
    %7 = vsyncpa [#allocation3], 0
    // Predicated region
    $region2: #{tpu_custom_call.1} parent=1 // pred_check
      _
    $region3: #{tpu_custom_call.1} parent=1 // pred_check_branch
      %9 = sbr.rel (0) target = $region5
    $region4: #{tpu_custom_call.1} parent=1 // pred_region
      _
    $region5: #{tpu_custom_call.1} parent=1 // pred_fallthru
      _
    // Predicated region
    $region6: #{tpu_custom_call.1} parent=1 // pred_check
      _
    $region7: #{tpu_custom_call.1} parent=1 // pred_check_branch
      %11 = sbr.rel (0) target = $region9
    $region8: #{tpu_custom_call.1} parent=1 // pred_region
      _
    $region9: #{tpu_custom_call.1} parent=1 // pred_fallthru
      _
    %v12 = vld [vmem:[%s1] sm:$0xff]
    %v13 = vld [vmem:[%s0] sm:$0xff]
    %15 = vrot.lane.b32.xlu0 %v12, 32
    %v16 = vpop.permute.xlu0 %15
    %vm18 = vcmask 261120
    %v19 = vsel %vm18, %v12, %v16
    %v20 = vadd.f32 %v13, %v19
    %vm21 = vcmask 523264
    %22 = vst.msk [vmem:[#allocation2] sm:$0xff] %vm21, %v20
    // Predicated region
    $region10: #{tpu_custom_call.1} parent=1 // pred_check
      _
    $region11: #{tpu_custom_call.1} parent=1 // pred_check_branch
      %24 = sbr.rel (0) target = $region13
    $region12: #{tpu_custom_call.1} parent=1 // pred_region
      %s26 = ssub.s32 128, 128
      %27 = vsyncadd [#allocation3], %s26
      %s29 = sshll.u32 [#allocation2], 4
      %s30 = int_to_ptr.vmem [resolvable:$true] %s29
      %32 = dma.vmem_to_hbm [thread:$0]  %s30, 128, %s2, [#allocation3]
    $region13: #{tpu_custom_call.1} parent=1 // pred_fallthru
      _
    // Predicated region
    $region14: #{tpu_custom_call.1} parent=1 // pred_check
      _
    $region15: #{tpu_custom_call.1} parent=1 // pred_check_branch
      %34 = sbr.rel (0) target = $region17
    $region16: #{tpu_custom_call.1} parent=1 // pred_region
      %35 = dma.done [#allocation3], 128
    $region17: #{tpu_custom_call.1} parent=1 // pred_fallthru
      _
    %36 = vsyncpa [#allocation3], 1

</llo_original>
